<compile_context>
chip_gen: v7x
topology: tpu7x:2x2x1
jax: 0.10.0
libtpu: 0.0.40
codegen_flags: <defaults>
</compile_context>

<pallas_src>
import functools

import jax
import jax.numpy as jnp
from jax.experimental import pallas as pl
from jax.experimental.pallas import tpu as pltpu


def _round_up(x, m):
    return ((x + m - 1) // m) * m


def mlp_kernel(x_ref, w1_ref, b1_ref, w2_ref, b2_ref, o_ref):
    # x tile: (tb, D) f32 -> bf16 cast in-kernel (keeps the HBM stream single-pass).
    x_bf = x_ref[...].astype(jnp.bfloat16)
    # h^T (H, tb) = W1 (H, D) @ x^T (D, tb): MXU dot with transposed-RHS
    # contraction, f32 accumulation.  Batch lives on lanes from here on.
    ht = jax.lax.dot_general(
        w1_ref[...], x_bf,
        dimension_numbers=(((1,), (1,)), ((), ())),
        preferred_element_type=jnp.float32,
    )
    ht = jnp.maximum(ht + b1_ref[...], 0.0)                   # (H, tb), bias bcast over lanes
    # fc2 (N=1): VPU multiply + reduction over the 16 hidden sublanes.
    z = jnp.sum(ht * w2_ref[...], axis=0, keepdims=True) + b2_ref[...]   # (1, tb)
    # sigmoid via exp + divide (exact, EUP); lane-dense (1, tb) store.
    o_ref[...] = (1.0 / (1.0 + jnp.exp(-z))).astype(o_ref.dtype)


@functools.partial(jax.jit, static_argnames=("tile_b",))
def net_forward(x, w1, b1, w2, b2, *, tile_b=16384):
    """Forward pass of `Net`.

    x : (B, D) float32
    w1: (16, D)  fc1.weight (PyTorch (out_features, in_features) layout)
    b1: (16,)    fc1.bias
    w2: (1, 16)  fc2.weight
    b2: (1,)     fc2.bias
    returns: (B, 1) float32
    """
    B, D = x.shape
    H = w1.shape[0]
    O = w2.shape[0]
    assert w1.shape == (H, D), f"w1 {w1.shape} != ({H},{D})"
    assert b1.shape == (H,), f"b1 {b1.shape} != ({H},)"
    assert w2.shape == (O, H), f"w2 {w2.shape} != ({O},{H})"
    assert b2.shape == (O,), f"b2 {b2.shape} != ({O},)"
    assert O == 1

    # Tile selection.  Multi-tile path needs tb % 128 == 0 (lane-dense output
    # block); for B < 256 use a single full-batch tile (block dims == array
    # dims satisfies the (8,128) rule without padding).  For B >= 256 the cap
    # at round_up(ceil(B/2), 128) guarantees >= 2 grid steps (v7x megacore).
    if B >= 256:
        tile_eff = max(128, (int(tile_b) // 128) * 128)
        tb = min(tile_eff, _round_up(pl.cdiv(B, 2), 128))
    else:
        tb = B
    grid = (pl.cdiv(B, tb),)

    # Resident parameters (tiny), reshaped once for the transposed layout.
    w1_bf = w1.astype(jnp.bfloat16)                  # (H, D) stationary MXU operand
    b1_col = b1.reshape(H, 1).astype(jnp.float32)    # broadcast over lanes
    w2_col = w2.reshape(H, 1).astype(jnp.float32)    # per-sublane fc2 weights
    b2_col = b2.reshape(1, 1).astype(jnp.float32)

    flops = 2 * B * (D * H + H * O)
    bytes_accessed = (B * D * 4          # x streamed once, f32
                      + D * H * 2        # w1 (bf16), resident
                      + (2 * H + 1) * 4  # b1, w2, b2
                      + B * O * 4)       # output, f32

    out = pl.pallas_call(
        mlp_kernel,
        out_shape=jax.ShapeDtypeStruct((1, B), jnp.float32),
        grid=grid,
        in_specs=[
            pl.BlockSpec((tb, D), lambda i: (i, 0)),   # x: streamed per batch tile
            pl.BlockSpec((H, D), lambda i: (0, 0)),    # w1: resident
            pl.BlockSpec((H, 1), lambda i: (0, 0)),    # b1: resident
            pl.BlockSpec((H, 1), lambda i: (0, 0)),    # w2: resident
            pl.BlockSpec((1, 1), lambda i: (0, 0)),    # b2: resident
        ],
        out_specs=pl.BlockSpec((1, tb), lambda i: (0, i)),    # lane-dense output
        compiler_params=pltpu.CompilerParams(
            dimension_semantics=("parallel",),
        ),
        cost_estimate=pl.CostEstimate(
            flops=flops,
            transcendentals=B,            # one sigmoid per row
            bytes_accessed=bytes_accessed,
        ),
    )(x.astype(jnp.float32), w1_bf, b1_col, w2_col, b2_col)

    return out.reshape(B, 1)


def init_params(key, input_size, hidden=16, out=1):
    """Deterministic synthetic parameters in PyTorch nn.Linear layout."""
    k1, k2, k3, k4 = jax.random.split(key, 4)
    w1 = jax.random.normal(k1, (hidden, input_size), jnp.float32) * 0.1
    b1 = jax.random.normal(k2, (hidden,), jnp.float32) * 0.1
    w2 = jax.random.normal(k3, (out, hidden), jnp.float32) * 0.1
    b2 = jax.random.normal(k4, (out,), jnp.float32) * 0.1
    return w1, b1, w2, b2


def _reference(x, w1, b1, w2, b2):
    # Same math as the PyTorch forward, with the same bf16 cast on the first
    # matmul operands (f32 accumulation), so tolerances stay tight.
    h = jax.lax.dot_general(
        x.astype(jnp.bfloat16), w1.astype(jnp.bfloat16),
        dimension_numbers=(((1,), (1,)), ((), ())),       # x @ w1.T
        preferred_element_type=jnp.float32)
    h = jnp.maximum(h + b1[None, :], 0.0)
    z = h @ w2.T.astype(jnp.float32) + b2[None, :]
    return jax.nn.sigmoid(z)


if __name__ == "__main__":
    key = jax.random.PRNGKey(0)
    kx, kp, kx2 = jax.random.split(key, 3)

    input_size = 30   # breast-cancer style tabular feature count
    w1, b1, w2, b2 = init_params(kp, input_size)

    # Small demo batch (single tile, block dims == array dims).
    batch = 8
    x = jax.random.normal(kx, (batch, input_size), jnp.float32)
    y = jax.block_until_ready(net_forward(x, w1, b1, w2, b2))
    ref = _reference(x, w1, b1, w2, b2)
    assert y.shape == (batch, 1)
    assert jnp.allclose(y, ref, atol=2e-3), "mismatch vs reference (small batch)"

    # Non-divisible batch: multi-step grid + partial tail block (no padding).
    batch2 = 4100
    x2 = jax.random.normal(kx2, (batch2, input_size), jnp.float32)
    y2 = jax.block_until_ready(net_forward(x2, w1, b1, w2, b2, tile_b=1024))
    ref2 = _reference(x2, w1, b1, w2, b2)
    assert y2.shape == (batch2, 1)
    assert jnp.allclose(y2, ref2, atol=2e-3), "mismatch vs reference (tiled batch)"

    print("KERNEL_OK")
</pallas_src>

<mosaic_0001>
module attributes {stable_mosaic.version = 11 : i64} {
  func.func @mlp_kernel(%arg0: i32, %arg1: memref<8x30xf32, #tpu.memory_space<vmem>>, %arg2: memref<16x30xbf16, #tpu.memory_space<vmem>>, %arg3: memref<16x1xf32, #tpu.memory_space<vmem>>, %arg4: memref<16x1xf32, #tpu.memory_space<vmem>>, %arg5: memref<1x1xf32, #tpu.memory_space<vmem>>, %arg6: memref<1x8xf32, #tpu.memory_space<vmem>>) attributes {dimension_semantics = [#tpu.dimension_semantics<parallel>], iteration_bounds = array<i64: 1>, scalar_prefetch = 0 : i64, scratch_operands = 0 : i64, tpu.core_type = #tpu.core_type<tc>, window_params = [{transform_indices = @transform_0, window_bounds = array<i64: 8, 30>}, {pipeline_mode = #tpu.pipeline_mode<synchronous>, transform_indices = @transform_1, window_bounds = array<i64: 16, 30>}, {pipeline_mode = #tpu.pipeline_mode<synchronous>, transform_indices = @transform_2, window_bounds = array<i64: 16, 1>}, {pipeline_mode = #tpu.pipeline_mode<synchronous>, transform_indices = @transform_3, window_bounds = array<i64: 16, 1>}, {pipeline_mode = #tpu.pipeline_mode<synchronous>, transform_indices = @transform_4, window_bounds = array<i64: 1, 1>}, {transform_indices = @transform_5, window_bounds = array<i64: 1, 8>}]} {
    %c0 = arith.constant 0 : index
    %c0_0 = arith.constant 0 : index
    %0 = vector.load %arg1[%c0, %c0_0] : memref<8x30xf32, #tpu.memory_space<vmem>>, vector<8x30xf32>
    %1 = arith.truncf %0 : vector<8x30xf32> to vector<8x30xbf16>
    %c0_1 = arith.constant 0 : index
    %c0_2 = arith.constant 0 : index
    %2 = vector.load %arg2[%c0_1, %c0_2] : memref<16x30xbf16, #tpu.memory_space<vmem>>, vector<16x30xbf16>
    %cst = arith.constant dense<0.000000e+00> : vector<16x8xf32>
    %3 = tpu.matmul %2, %1, %cst {dimension_numbers = #tpu.dot_dimension_numbers<[1], [1], [0], [0], [0, 0, 1, 0], [], []>} : vector<16x30xbf16>, vector<8x30xbf16>, vector<16x8xf32> -> vector<16x8xf32>
    %c0_3 = arith.constant 0 : index
    %c0_4 = arith.constant 0 : index
    %4 = vector.load %arg3[%c0_3, %c0_4] : memref<16x1xf32, #tpu.memory_space<vmem>>, vector<16x1xf32>
    %5 = vector.broadcast %4 : vector<16x1xf32> to vector<16x8xf32>
    %6 = arith.addf %3, %5 : vector<16x8xf32>
    %cst_5 = arith.constant 0.000000e+00 : f32
    %7 = vector.broadcast %cst_5 : f32 to vector<16x8xf32>
    %8 = arith.maximumf %6, %7 : vector<16x8xf32>
    %c0_6 = arith.constant 0 : index
    %c0_7 = arith.constant 0 : index
    %9 = vector.load %arg4[%c0_6, %c0_7] : memref<16x1xf32, #tpu.memory_space<vmem>>, vector<16x1xf32>
    %10 = vector.broadcast %9 : vector<16x1xf32> to vector<16x8xf32>
    %11 = arith.mulf %8, %10 : vector<16x8xf32>
    %cst_8 = arith.constant dense<0.000000e+00> : vector<8xf32>
    %12 = vector.multi_reduction <add>, %11, %cst_8 [0] : vector<16x8xf32> to vector<8xf32>
    %13 = vector.shape_cast %12 : vector<8xf32> to vector<1x8xf32>
    %c0_9 = arith.constant 0 : index
    %c0_10 = arith.constant 0 : index
    %14 = vector.load %arg5[%c0_9, %c0_10] : memref<1x1xf32, #tpu.memory_space<vmem>>, vector<1x1xf32>
    %15 = vector.broadcast %14 : vector<1x1xf32> to vector<1x8xf32>
    %16 = arith.addf %13, %15 : vector<1x8xf32>
    %cst_11 = arith.constant 0.000000e+00 : f32
    %17 = vector.broadcast %cst_11 : f32 to vector<1x8xf32>
    %18 = arith.subf %17, %16 : vector<1x8xf32>
    %19 = math.exp %18 : vector<1x8xf32>
    %cst_12 = arith.constant 1.000000e+00 : f32
    %20 = vector.broadcast %cst_12 : f32 to vector<1x8xf32>
    %21 = arith.addf %20, %19 : vector<1x8xf32>
    %cst_13 = arith.constant 1.000000e+00 : f32
    %22 = vector.broadcast %cst_13 : f32 to vector<1x8xf32>
    %23 = arith.divf %22, %21 : vector<1x8xf32>
    %c0_14 = arith.constant 0 : index
    %c0_15 = arith.constant 0 : index
    %24 = vector.load %arg6[%c0_14, %c0_15] : memref<1x8xf32, #tpu.memory_space<vmem>>, vector<1x8xf32>
    tpu.vector_store %arg6[%c0_14, %c0_15], %23 {strides = array<i32>} : memref<1x8xf32, #tpu.memory_space<vmem>>, vector<1x8xf32>,
    return
  }
  func.func @transform_0(%arg0: i32) -> (i32, i32) {
    %c0_i32 = arith.constant 0 : i32
    %c0_i32_0 = arith.constant 0 : i32
    return %arg0, %c0_i32 : i32, i32
  }
  func.func @transform_1(%arg0: i32) -> (i32, i32) {
    %c0_i32 = arith.constant 0 : i32
    %c0_i32_0 = arith.constant 0 : i32
    %c0_i32_1 = arith.constant 0 : i32
    return %c0_i32, %c0_i32_0 : i32, i32
  }
  func.func @transform_2(%arg0: i32) -> (i32, i32) {
    %c0_i32 = arith.constant 0 : i32
    %c0_i32_0 = arith.constant 0 : i32
    %c0_i32_1 = arith.constant 0 : i32
    return %c0_i32, %c0_i32_0 : i32, i32
  }
  func.func @transform_3(%arg0: i32) -> (i32, i32) {
    %c0_i32 = arith.constant 0 : i32
    %c0_i32_0 = arith.constant 0 : i32
    %c0_i32_1 = arith.constant 0 : i32
    return %c0_i32, %c0_i32_0 : i32, i32
  }
  func.func @transform_4(%arg0: i32) -> (i32, i32) {
    %c0_i32 = arith.constant 0 : i32
    %c0_i32_0 = arith.constant 0 : i32
    %c0_i32_1 = arith.constant 0 : i32
    return %c0_i32, %c0_i32_0 : i32, i32
  }
  func.func @transform_5(%arg0: i32) -> (i32, i32) {
    %c0_i32 = arith.constant 0 : i32
    %c0_i32_0 = arith.constant 0 : i32
    return %c0_i32, %arg0 : i32, i32
  }
}

</mosaic_0001>

<llo_original>
// kernel: net_forward.1
$region0: #{net_forward.1}
  #allocation0 [shape = 'u32[]', space=smem, size = 0x4, offset = 0x4, fixed_abs, tag = 'smem constant byte address 0x4 - core index']
  #allocation1 [shape = 'u32[144,128]{1,0:T(1,128)}', space=vmem, size = 0x12000, scoped, tag = 'internal scratch']
  #allocation2 [shape = 'f32[1,1]{1,0:T(1,128)S(1)}', space=vmem, size = 0x200, scoped, tag = 'scoped memory for net_forward.1']
  %s0 = inlined_call_operand.vmem [shape: f32[8,30], index: 0, kind: input, shape index: {}]
  %s1 = inlined_call_operand.vmem [shape: bf16[16,30], index: 1, kind: input, shape index: {}]
  %s2 = inlined_call_operand.vmem [shape: f32[16,1], index: 2, kind: input, shape index: {}]
  %s3 = inlined_call_operand.vmem [shape: f32[16,1], index: 3, kind: input, shape index: {}]
  %s4 = inlined_call_operand.<no memory space> [shape: f32[1,1], index: 4, kind: input, shape index: {}]
  %s5 = inlined_call_operand.hbm [shape: f32[1,8], index: 5, kind: output, shape index: {}]
  %s6 = sld [smem:[#allocation0]]
  $region30: #{net_forward.1} parent=0
    _
  %s8 = ssub.s32 1, %s6
  %s9 = scalar_select 0, %s8, %s6
  %v10 = vstv %s4
  %11 = vst [vmem:[#allocation2] sm:$0x1] %v10
  $region1: #{net_forward.1} parent=0
    #allocation3 [shape = 'u8[512]{0}', space=vmem, size = 0x400, scoped, tag = 'output window, operand 0, single buffered']
    #allocation4 [shape = 's32[1]{0}', space=sflag, size = 0x4, scoped, tag = 'scoped memory for net_forward.1']
    %12 = vsyncpa [#allocation4], 0
    // Predicated region
    $region2: #{net_forward.1} parent=1 // pred_check
      _
    $region3: #{net_forward.1} parent=1 // pred_check_branch
      %14 = sbr.rel (0) target = $region5
    $region4: #{net_forward.1} parent=1 // pred_region
      _
    $region5: #{net_forward.1} parent=1 // pred_fallthru
      _
    // Predicated region
    $region6: #{net_forward.1} parent=1 // pred_check
      _
    $region7: #{net_forward.1} parent=1 // pred_check_branch
      %16 = sbr.rel (0) target = $region9
    $region8: #{net_forward.1} parent=1 // pred_region
      _
    $region9: #{net_forward.1} parent=1 // pred_fallthru
      _
    // Predicated region
    $region10: #{net_forward.1} parent=1 // pred_check
      _
    $region11: #{net_forward.1} parent=1 // pred_check_branch
      %18 = sbr.rel (0) target = $region13
    $region12: #{net_forward.1} parent=1 // pred_region
      _
    $region13: #{net_forward.1} parent=1 // pred_fallthru
      _
    // Predicated region
    $region14: #{net_forward.1} parent=1 // pred_check
      _
    $region15: #{net_forward.1} parent=1 // pred_check_branch
      %20 = sbr.rel (0) target = $region17
    $region16: #{net_forward.1} parent=1 // pred_region
      _
    $region17: #{net_forward.1} parent=1 // pred_fallthru
      _
    // Predicated region
    $region18: #{net_forward.1} parent=1 // pred_check
      _
    $region19: #{net_forward.1} parent=1 // pred_check_branch
      %22 = sbr.rel (0) target = $region21
    $region20: #{net_forward.1} parent=1 // pred_region
      _
    $region21: #{net_forward.1} parent=1 // pred_fallthru
      _
    %v24 = vld [vmem:[%s0] sm:$0xff]
    %v25 = vpack.c.bf16 %v24, %v24
    %v26 = vld [vmem:[%s1] sm:$0xf]
    %v27 = vld [vmem:[%s1 + $0x4] sm:$0xf]
    %v28 = vld [vmem:[%s2] sm:$0xff]
    %v29 = vld [vmem:[%s2 + $0x8] sm:$0xff]
    %31 = vset.pattern.permute.xlu0 0
    %32 = vperm.xlu0 %31, %v28
    %v33 = vpop.permute.xlu0 %32
    %36 = vset.pattern.permute.xlu0 0
    %37 = vperm.xlu0 %36, %v29
    %v38 = vpop.permute.xlu0 %37
    %v42 = vunpack.c.l.b16 %v26
    %v43 = vunpack.c.l.b16 %v27
    %v44 = vpack.c.b16 %v43, %v42
    %vm45 = vcmask 244736
    %v47 = vsel %vm45, %v44, 0
    %v50 = vsel %vm45, %v25, 0
    %52 = vmatprep.subr.bf16.mxu0 0
    %53 = vmatpush1.bf16.xpose.msra.mxu0 %v50
    %54 = vmatprep.subr.bf16.mxu0 0
    %55 = vmatpush1.bf16.xpose.msra.mxu0 0
    %56 = vmatprep.subr.bf16.mxu0 0
    %57 = vmatpush1.bf16.xpose.msra.mxu0 0
    %58 = vmatprep.subr.bf16.mxu0 0
    %59 = vmatpush1.bf16.xpose.msra.mxu0 0
    %60 = vmatprep.subr.bf16.mxu0 0
    %61 = vmatpush1.bf16.xpose.msra.mxu0 0
    %62 = vmatprep.subr.bf16.mxu0 0
    %63 = vmatpush1.bf16.xpose.msra.mxu0 0
    %64 = vmatprep.subr.bf16.mxu0 0
    %65 = vmatpush1.bf16.xpose.msra.mxu0 0
    %66 = vmatprep.subr.bf16.mxu0 0
    %67 = vmatpush1.bf16.xpose.msra.mxu0 0
    %68 = vmatprep.subr.bf16.mxu0 0
    %69 = vmatpush1.bf16.xpose.msra.mxu0 0
    %70 = vmatprep.subr.bf16.mxu0 0
    %71 = vmatpush1.bf16.xpose.msra.mxu0 0
    %72 = vmatprep.subr.bf16.mxu0 0
    %73 = vmatpush1.bf16.xpose.msra.mxu0 0
    %74 = vmatprep.subr.bf16.mxu0 0
    %75 = vmatpush1.bf16.xpose.msra.mxu0 0
    %76 = vmatprep.subr.bf16.mxu0 0
    %77 = vmatpush1.bf16.xpose.msra.mxu0 0
    %78 = vmatprep.subr.bf16.mxu0 0
    %79 = vmatpush1.bf16.xpose.msra.mxu0 0
    %80 = vmatprep.subr.bf16.mxu0 0
    %81 = vmatpush1.bf16.xpose.msra.mxu0 0
    %82 = vmatprep.subr.bf16.mxu0 0
    %83 = vmatpush1.bf16.xpose.msra.mxu0 0
    %84 = vmatprep.mubr.bf16.mxu0 0
    %85 = vmatmul.mubr.bf16.gmra.mrb[0].mxu0 %v47
    %v86 = vpop.f32.mrb[0].mxu0
    %v87 = vadd.f32 %v33, %v86
    %v88 = vpop.f32.mrb[0].mxu0
    %v89 = vpop.f32.mrb[0].mxu0
    %v90 = vadd.f32 %v38, %v89
    %v91 = vpop.f32.mrb[0].mxu0
    %92 = vdwg.mxu0
    %v93 = vmax.f32 %v87, 0.0
    %v94 = vmax.f32 %v90, 0.0
    %v95 = vld [vmem:[%s3] sm:$0xff]
    %v96 = vld [vmem:[%s3 + $0x8] sm:$0xff]
    %98 = vset.pattern.permute.xlu0 0
    %99 = vperm.xlu0 %98, %v95
    %v100 = vpop.permute.xlu0 %99
    %103 = vset.pattern.permute.xlu0 0
    %104 = vperm.xlu0 %103, %v96
    %v105 = vpop.permute.xlu0 %104
    %v107 = vmul.f32 %v93, %v100
    %v108 = vmul.f32 %v94, %v105
    %vm109 = vcmask 64512
    %v110 = vsel %vm109, %v107, 0.0
    %v111 = vsel %vm109, %v108, 0.0
    %v112 = vadd.f32 %v110, %v111
    %v113 = vrot.slane %v112, 4
    %v114 = vadd.f32 %v112, %v113
    %v115 = vrot.slane %v114, 2
    %v116 = vadd.f32 %v114, %v115
    %v117 = vrot.slane %v116, 1
    %v118 = vadd.f32 %v116, %v117
    %v119 = vld [vmem:[#allocation2] sm:$0x1]
    %121 = vset.pattern.permute.xlu0 0
    %122 = vperm.xlu0 %121, %v119
    %v123 = vpop.permute.xlu0 %122
    %v125 = vlaneseq
    %v126 = vshrl.u32 %v125, 7
    %v127 = vsub.s32 0, %v126
    %v128 = vrot.slane %v123, %v127
    %v129 = vadd.f32 %v118, %v128
    %v130 = vsub.f32 0.0, %v129
    %v131 = vmul.f32 %v130, 1.442695
    %v132 = vpow.pop %v131
    %v133 = vadd.f32 %v132, 1.0
    %v134 = vrcp.pop %v133
    %v135 = vmul.f32 1.0, %v134
    %vm136 = vcmask 57344
    %137 = vst.msk [vmem:[#allocation3] sm:$0x1] %vm136, %v135
    // Predicated region
    $region22: #{net_forward.1} parent=1 // pred_check
      _
    $region23: #{net_forward.1} parent=1 // pred_check_branch
      %139 = sbr.rel (0) target = $region25
    $region24: #{net_forward.1} parent=1 // pred_region
      %s141 = ssub.s32 16, 16
      %142 = vsyncadd [#allocation4], %s141
      %s144 = sshll.u32 [#allocation3], 4
      %s145 = int_to_ptr.vmem [resolvable:$true] %s144
      %147 = dma.vmem_to_hbm [thread:$0]  %s145, 16, %s5, [#allocation4]
    $region25: #{net_forward.1} parent=1 // pred_fallthru
      _
    // Predicated region
    $region26: #{net_forward.1} parent=1 // pred_check
      _
    $region27: #{net_forward.1} parent=1 // pred_check_branch
      %149 = sbr.rel (0) target = $region29
    $region28: #{net_forward.1} parent=1 // pred_region
      %150 = dma.done [#allocation4], 16
    $region29: #{net_forward.1} parent=1 // pred_fallthru
      _
    %151 = vsyncpa [#allocation4], 1

</llo_original>
